<compile_context>
chip_gen: v6e
topology: v6e:2x2x1
jax: 0.10.0
libtpu: 0.0.40
codegen_flags: <defaults>
</compile_context>

<pallas_src>
import jax
import jax.numpy as jnp
from jax.experimental import pallas as pl
from jax.experimental.pallas import tpu as pltpu

_PI = 3.14159                      # matches the torch.jit.script constant
_A = (2.0 * _PI) ** 0.5            # sqrt(2*pi)


def _round_up(a, b):
    return ((a + b - 1) // b) * b


def _gaussian_kernel(x_ref, mul_ref, bias_ref, mean_ref, inv_std_ref,
                     coef_ref, o_ref):
    # Per-row affine transform: [TM, 1]
    t = mul_ref[...] * x_ref[...] + bias_ref[...]
    # Gaussian basis expansion over K lanes: [TM, 1] x [1, K] -> [TM, K]
    z = (t - mean_ref[...]) * inv_std_ref[...]
    out = jnp.exp(-0.5 * (z * z)) * coef_ref[...]
    o_ref[...] = out.astype(o_ref.dtype)


def gaussian_layer(x, edge_type, means, stds, mul_w, bias_w, *, tile_m=1024):
    """x: [B, N, N] float; edge_type: [B, N, N] int32.
    means/stds: [1, K]; mul_w/bias_w: [edge_types, 1].
    Returns [B, N, N, K] in means.dtype (matches `.type_as(means.weight)`)."""
    K = means.shape[-1]
    out_dtype = means.dtype
    lead_shape = x.shape

    # Flatten rows; compute everything in f32 (torch does x.float()).
    xf = x.reshape(-1).astype(jnp.float32)
    et = edge_type.reshape(-1)
    # Embedding lookups (edge-type gather) in the wrapper — tiny O(M) traffic.
    mul = jnp.take(mul_w.reshape(-1), et, axis=0).astype(jnp.float32)
    bias = jnp.take(bias_w.reshape(-1), et, axis=0).astype(jnp.float32)

    mean = means.reshape(1, K).astype(jnp.float32)
    std = jnp.abs(stds.reshape(1, K).astype(jnp.float32)) + 1e-5
    inv_std = 1.0 / std
    coef = inv_std / jnp.float32(_A)          # 1 / (sqrt(2*pi) * std)

    m = xf.shape[0]
    tm = min(tile_m, _round_up(m, 8))         # 8-aligned sublane tile
    m_pad = _round_up(m, tm)
    if m_pad != m:
        pad = m_pad - m
        xf = jnp.pad(xf, (0, pad))
        mul = jnp.pad(mul, (0, pad))
        bias = jnp.pad(bias, (0, pad))

    x2 = xf.reshape(m_pad, 1)
    mul2 = mul.reshape(m_pad, 1)
    bias2 = bias.reshape(m_pad, 1)

    grid = (m_pad // tm,)
    row_spec = pl.BlockSpec((tm, 1), lambda i: (i, 0))      # per-row tiles
    kconst_spec = pl.BlockSpec((1, K), lambda i: (0, 0))    # VMEM-resident

    cost = pl.CostEstimate(
        flops=6 * m_pad * K,
        transcendentals=m_pad * K,
        bytes_accessed=4 * (3 * m_pad + 3 * K + m_pad * K),
    )

    out2 = pl.pallas_call(
        _gaussian_kernel,
        out_shape=jax.ShapeDtypeStruct((m_pad, K), out_dtype),
        grid_spec=pltpu.PrefetchScalarGridSpec(
            num_scalar_prefetch=0,
            grid=grid,
            in_specs=[row_spec, row_spec, row_spec,
                      kconst_spec, kconst_spec, kconst_spec],
            out_specs=pl.BlockSpec((tm, K), lambda i: (i, 0)),
        ),
        compiler_params=pltpu.CompilerParams(
            dimension_semantics=("parallel",)),
        cost_estimate=cost,
    )(x2, mul2, bias2, mean, inv_std, coef)

    return out2[:m].reshape(*lead_shape, K)


def init_params(key, K=128, edge_types=1024, dtype=jnp.float32):
    """Synthetic parameters matching GaussianLayer parameter shapes.
    (torch init uses mul=1, bias=0 constants; random values are used here so
    the edge-type gather path is actually exercised by the check.)"""
    k1, k2, k3, k4 = jax.random.split(key, 4)
    means = jax.random.uniform(k1, (1, K), dtype, 0.0, 3.0)
    stds = jax.random.uniform(k2, (1, K), dtype, 0.0, 3.0)
    mul_w = 1.0 + 0.1 * jax.random.normal(k3, (edge_types, 1), dtype)
    bias_w = 0.1 * jax.random.normal(k4, (edge_types, 1), dtype)
    return means, stds, mul_w, bias_w


if __name__ == "__main__":
    # GaussianLayer(K=128, edge_types=1024) on a small pairwise-distance input.
    B, N, K, edge_types = 2, 8, 128, 1024
    key = jax.random.PRNGKey(0)
    kx, ke, kp = jax.random.split(key, 3)

    x = jax.random.normal(kx, (B, N, N), jnp.float32) * 2.0 + 1.5
    edge_type = jax.random.randint(ke, (B, N, N), 0, edge_types, jnp.int32)
    means, stds, mul_w, bias_w = init_params(kp, K, edge_types)

    y = gaussian_layer(x, edge_type, means, stds, mul_w, bias_w)
    y = jax.block_until_ready(y)

    # Plain-JAX reference (same math as the PyTorch module).
    mul_r = mul_w.reshape(-1)[edge_type]
    bias_r = bias_w.reshape(-1)[edge_type]
    t = (mul_r * x + bias_r)[..., None].astype(jnp.float32)
    mean_r = means.reshape(-1).astype(jnp.float32)
    std_r = jnp.abs(stds.reshape(-1).astype(jnp.float32)) + 1e-5
    a = (2.0 * 3.14159) ** 0.5
    y_ref = (jnp.exp(-0.5 * ((t - mean_r) / std_r) ** 2)
             / (a * std_r)).astype(means.dtype)

    assert y.shape == (B, N, N, K)
    assert jnp.allclose(y, y_ref, atol=1e-5, rtol=2e-5), float(
        jnp.max(jnp.abs(y - y_ref)))

    print("KERNEL_OK")
</pallas_src>

<mosaic_0001>
module attributes {stable_mosaic.version = 11 : i64} {
  func.func @_gaussian_kernel(%arg0: i32, %arg1: memref<128x1xf32, #tpu.memory_space<vmem>>, %arg2: memref<128x1xf32, #tpu.memory_space<vmem>>, %arg3: memref<128x1xf32, #tpu.memory_space<vmem>>, %arg4: memref<1x128xf32, #tpu.memory_space<vmem>>, %arg5: memref<1x128xf32, #tpu.memory_space<vmem>>, %arg6: memref<1x128xf32, #tpu.memory_space<vmem>>, %arg7: memref<128x128xf32, #tpu.memory_space<vmem>>) attributes {dimension_semantics = [#tpu.dimension_semantics<parallel>], iteration_bounds = array<i64: 1>, scalar_prefetch = 0 : i64, scratch_operands = 0 : i64, tpu.core_type = #tpu.core_type<tc>, window_params = [{transform_indices = @transform_0, window_bounds = array<i64: 128, 1>}, {transform_indices = @transform_1, window_bounds = array<i64: 128, 1>}, {transform_indices = @transform_2, window_bounds = array<i64: 128, 1>}, {pipeline_mode = #tpu.pipeline_mode<synchronous>, transform_indices = @transform_3, window_bounds = array<i64: 1, 128>}, {pipeline_mode = #tpu.pipeline_mode<synchronous>, transform_indices = @transform_4, window_bounds = array<i64: 1, 128>}, {pipeline_mode = #tpu.pipeline_mode<synchronous>, transform_indices = @transform_5, window_bounds = array<i64: 1, 128>}, {transform_indices = @transform_6, window_bounds = array<i64: 128, 128>}]} {
    %c0 = arith.constant 0 : index
    %c0_0 = arith.constant 0 : index
    %0 = vector.load %arg2[%c0, %c0_0] : memref<128x1xf32, #tpu.memory_space<vmem>>, vector<128x1xf32>
    %c0_1 = arith.constant 0 : index
    %c0_2 = arith.constant 0 : index
    %1 = vector.load %arg1[%c0_1, %c0_2] : memref<128x1xf32, #tpu.memory_space<vmem>>, vector<128x1xf32>
    %2 = arith.mulf %0, %1 : vector<128x1xf32>
    %c0_3 = arith.constant 0 : index
    %c0_4 = arith.constant 0 : index
    %3 = vector.load %arg3[%c0_3, %c0_4] : memref<128x1xf32, #tpu.memory_space<vmem>>, vector<128x1xf32>
    %4 = arith.addf %2, %3 : vector<128x1xf32>
    %c0_5 = arith.constant 0 : index
    %c0_6 = arith.constant 0 : index
    %5 = vector.load %arg4[%c0_5, %c0_6] : memref<1x128xf32, #tpu.memory_space<vmem>>, vector<1x128xf32>
    %6 = vector.broadcast %4 : vector<128x1xf32> to vector<128x128xf32>
    %7 = vector.broadcast %5 : vector<1x128xf32> to vector<128x128xf32>
    %8 = arith.subf %6, %7 : vector<128x128xf32>
    %c0_7 = arith.constant 0 : index
    %c0_8 = arith.constant 0 : index
    %9 = vector.load %arg5[%c0_7, %c0_8] : memref<1x128xf32, #tpu.memory_space<vmem>>, vector<1x128xf32>
    %10 = vector.broadcast %9 : vector<1x128xf32> to vector<128x128xf32>
    %11 = arith.mulf %8, %10 : vector<128x128xf32>
    %12 = arith.mulf %11, %11 : vector<128x128xf32>
    %cst = arith.constant -5.000000e-01 : f32
    %13 = vector.broadcast %cst : f32 to vector<128x128xf32>
    %14 = arith.mulf %13, %12 : vector<128x128xf32>
    %15 = math.exp %14 : vector<128x128xf32>
    %c0_9 = arith.constant 0 : index
    %c0_10 = arith.constant 0 : index
    %16 = vector.load %arg6[%c0_9, %c0_10] : memref<1x128xf32, #tpu.memory_space<vmem>>, vector<1x128xf32>
    %17 = vector.broadcast %16 : vector<1x128xf32> to vector<128x128xf32>
    %18 = arith.mulf %15, %17 : vector<128x128xf32>
    %c0_11 = arith.constant 0 : index
    %c0_12 = arith.constant 0 : index
    %19 = vector.load %arg7[%c0_11, %c0_12] : memref<128x128xf32, #tpu.memory_space<vmem>>, vector<128x128xf32>
    tpu.vector_store %arg7[%c0_11, %c0_12], %18 {strides = array<i32>} : memref<128x128xf32, #tpu.memory_space<vmem>>, vector<128x128xf32>,
    return
  }
  func.func @transform_0(%arg0: i32) -> (i32, i32) {
    %c0_i32 = arith.constant 0 : i32
    %c0_i32_0 = arith.constant 0 : i32
    return %arg0, %c0_i32 : i32, i32
  }
  func.func @transform_1(%arg0: i32) -> (i32, i32) {
    %c0_i32 = arith.constant 0 : i32
    %c0_i32_0 = arith.constant 0 : i32
    return %arg0, %c0_i32 : i32, i32
  }
  func.func @transform_2(%arg0: i32) -> (i32, i32) {
    %c0_i32 = arith.constant 0 : i32
    %c0_i32_0 = arith.constant 0 : i32
    return %arg0, %c0_i32 : i32, i32
  }
  func.func @transform_3(%arg0: i32) -> (i32, i32) {
    %c0_i32 = arith.constant 0 : i32
    %c0_i32_0 = arith.constant 0 : i32
    %c0_i32_1 = arith.constant 0 : i32
    return %c0_i32, %c0_i32_0 : i32, i32
  }
  func.func @transform_4(%arg0: i32) -> (i32, i32) {
    %c0_i32 = arith.constant 0 : i32
    %c0_i32_0 = arith.constant 0 : i32
    %c0_i32_1 = arith.constant 0 : i32
    return %c0_i32, %c0_i32_0 : i32, i32
  }
  func.func @transform_5(%arg0: i32) -> (i32, i32) {
    %c0_i32 = arith.constant 0 : i32
    %c0_i32_0 = arith.constant 0 : i32
    %c0_i32_1 = arith.constant 0 : i32
    return %c0_i32, %c0_i32_0 : i32, i32
  }
  func.func @transform_6(%arg0: i32) -> (i32, i32) {
    %c0_i32 = arith.constant 0 : i32
    %c0_i32_0 = arith.constant 0 : i32
    return %arg0, %c0_i32 : i32, i32
  }
}

</mosaic_0001>

<llo_original>
// kernel: tpu_custom_call.1
$region0: #{tpu_custom_call.1}
  #allocation0 [shape = 'u32[]', space=smem, size = 0x4, offset = 0x4, fixed_abs, tag = 'smem constant byte address 0x4 - core index']
  #allocation1 [shape = 'u32[144,128]{1,0:T(1,128)}', space=vmem, size = 0x12000, scoped, tag = 'internal scratch']
  %s0 = inlined_call_operand.vmem [shape: f32[128,1], index: 0, kind: input, shape index: {}]
  %s1 = inlined_call_operand.vmem [shape: f32[128,1], index: 1, kind: input, shape index: {}]
  %s2 = inlined_call_operand.vmem [shape: f32[128,1], index: 2, kind: input, shape index: {}]
  %s3 = inlined_call_operand.vmem [shape: f32[1,128], index: 3, kind: input, shape index: {}]
  %s4 = inlined_call_operand.vmem [shape: f32[1,128], index: 4, kind: input, shape index: {}]
  %s5 = inlined_call_operand.vmem [shape: f32[1,128], index: 5, kind: input, shape index: {}]
  %s6 = inlined_call_operand.hbm [shape: f32[128,128], index: 6, kind: output, shape index: {}]
  %s7 = sld [smem:[#allocation0]]
  $region34: #{tpu_custom_call.1} parent=0
    _
  %s9 = ssub.s32 1, %s7
  %s10 = scalar_select 0, %s9, %s7
  $region1: #{tpu_custom_call.1} parent=0
    #allocation2 [shape = 'u8[65536]{0}', space=vmem, size = 0x10000, scoped, tag = 'output window, operand 0, single buffered']
    #allocation3 [shape = 's32[1]{0}', space=sflag, size = 0x4, scoped, tag = 'scoped memory for tpu_custom_call.1']
    %11 = vsyncpa [#allocation3], 0
    // Predicated region
    $region2: #{tpu_custom_call.1} parent=1 // pred_check
      _
    $region3: #{tpu_custom_call.1} parent=1 // pred_check_branch
      %13 = sbr.rel (0) target = $region5
    $region4: #{tpu_custom_call.1} parent=1 // pred_region
      _
    $region5: #{tpu_custom_call.1} parent=1 // pred_fallthru
      _
    // Predicated region
    $region6: #{tpu_custom_call.1} parent=1 // pred_check
      _
    $region7: #{tpu_custom_call.1} parent=1 // pred_check_branch
      %15 = sbr.rel (0) target = $region9
    $region8: #{tpu_custom_call.1} parent=1 // pred_region
      _
    $region9: #{tpu_custom_call.1} parent=1 // pred_fallthru
      _
    // Predicated region
    $region10: #{tpu_custom_call.1} parent=1 // pred_check
      _
    $region11: #{tpu_custom_call.1} parent=1 // pred_check_branch
      %17 = sbr.rel (0) target = $region13
    $region12: #{tpu_custom_call.1} parent=1 // pred_region
      _
    $region13: #{tpu_custom_call.1} parent=1 // pred_fallthru
      _
    // Predicated region
    $region14: #{tpu_custom_call.1} parent=1 // pred_check
      _
    $region15: #{tpu_custom_call.1} parent=1 // pred_check_branch
      %19 = sbr.rel (0) target = $region17
    $region16: #{tpu_custom_call.1} parent=1 // pred_region
      _
    $region17: #{tpu_custom_call.1} parent=1 // pred_fallthru
      _
    // Predicated region
    $region18: #{tpu_custom_call.1} parent=1 // pred_check
      _
    $region19: #{tpu_custom_call.1} parent=1 // pred_check_branch
      %21 = sbr.rel (0) target = $region21
    $region20: #{tpu_custom_call.1} parent=1 // pred_region
      _
    $region21: #{tpu_custom_call.1} parent=1 // pred_fallthru
      _
    // Predicated region
    $region22: #{tpu_custom_call.1} parent=1 // pred_check
      _
    $region23: #{tpu_custom_call.1} parent=1 // pred_check_branch
      %23 = sbr.rel (0) target = $region25
    $region24: #{tpu_custom_call.1} parent=1 // pred_region
      _
    $region25: #{tpu_custom_call.1} parent=1 // pred_fallthru
      _
    %v24 = vld [vmem:[%s1] sm:$0xff]
    %v25 = vld [vmem:[%s1 + $0x8] sm:$0xff]
    %v26 = vld [vmem:[%s1 + $0x10] sm:$0xff]
    %v27 = vld [vmem:[%s1 + $0x18] sm:$0xff]
    %v28 = vld [vmem:[%s1 + $0x20] sm:$0xff]
    %v29 = vld [vmem:[%s1 + $0x28] sm:$0xff]
    %v30 = vld [vmem:[%s1 + $0x30] sm:$0xff]
    %v31 = vld [vmem:[%s1 + $0x38] sm:$0xff]
    %v32 = vld [vmem:[%s1 + $0x40] sm:$0xff]
    %v33 = vld [vmem:[%s1 + $0x48] sm:$0xff]
    %v34 = vld [vmem:[%s1 + $0x50] sm:$0xff]
    %v35 = vld [vmem:[%s1 + $0x58] sm:$0xff]
    %v36 = vld [vmem:[%s1 + $0x60] sm:$0xff]
    %v37 = vld [vmem:[%s1 + $0x68] sm:$0xff]
    %v38 = vld [vmem:[%s1 + $0x70] sm:$0xff]
    %v39 = vld [vmem:[%s1 + $0x78] sm:$0xff]
    %v40 = vld [vmem:[%s0] sm:$0xff]
    %v41 = vld [vmem:[%s0 + $0x8] sm:$0xff]
    %v42 = vld [vmem:[%s0 + $0x10] sm:$0xff]
    %v43 = vld [vmem:[%s0 + $0x18] sm:$0xff]
    %v44 = vld [vmem:[%s0 + $0x20] sm:$0xff]
    %v45 = vld [vmem:[%s0 + $0x28] sm:$0xff]
    %v46 = vld [vmem:[%s0 + $0x30] sm:$0xff]
    %v47 = vld [vmem:[%s0 + $0x38] sm:$0xff]
    %v48 = vld [vmem:[%s0 + $0x40] sm:$0xff]
    %v49 = vld [vmem:[%s0 + $0x48] sm:$0xff]
    %v50 = vld [vmem:[%s0 + $0x50] sm:$0xff]
    %v51 = vld [vmem:[%s0 + $0x58] sm:$0xff]
    %v52 = vld [vmem:[%s0 + $0x60] sm:$0xff]
    %v53 = vld [vmem:[%s0 + $0x68] sm:$0xff]
    %v54 = vld [vmem:[%s0 + $0x70] sm:$0xff]
    %v55 = vld [vmem:[%s0 + $0x78] sm:$0xff]
    %v56 = vmul.f32 %v24, %v40
    %v57 = vmul.f32 %v25, %v41
    %v58 = vmul.f32 %v26, %v42
    %v59 = vmul.f32 %v27, %v43
    %v60 = vmul.f32 %v28, %v44
    %v61 = vmul.f32 %v29, %v45
    %v62 = vmul.f32 %v30, %v46
    %v63 = vmul.f32 %v31, %v47
    %v64 = vmul.f32 %v32, %v48
    %v65 = vmul.f32 %v33, %v49
    %v66 = vmul.f32 %v34, %v50
    %v67 = vmul.f32 %v35, %v51
    %v68 = vmul.f32 %v36, %v52
    %v69 = vmul.f32 %v37, %v53
    %v70 = vmul.f32 %v38, %v54
    %v71 = vmul.f32 %v39, %v55
    %v72 = vld [vmem:[%s2] sm:$0xff]
    %v73 = vld [vmem:[%s2 + $0x8] sm:$0xff]
    %v74 = vld [vmem:[%s2 + $0x10] sm:$0xff]
    %v75 = vld [vmem:[%s2 + $0x18] sm:$0xff]
    %v76 = vld [vmem:[%s2 + $0x20] sm:$0xff]
    %v77 = vld [vmem:[%s2 + $0x28] sm:$0xff]
    %v78 = vld [vmem:[%s2 + $0x30] sm:$0xff]
    %v79 = vld [vmem:[%s2 + $0x38] sm:$0xff]
    %v80 = vld [vmem:[%s2 + $0x40] sm:$0xff]
    %v81 = vld [vmem:[%s2 + $0x48] sm:$0xff]
    %v82 = vld [vmem:[%s2 + $0x50] sm:$0xff]
    %v83 = vld [vmem:[%s2 + $0x58] sm:$0xff]
    %v84 = vld [vmem:[%s2 + $0x60] sm:$0xff]
    %v85 = vld [vmem:[%s2 + $0x68] sm:$0xff]
    %v86 = vld [vmem:[%s2 + $0x70] sm:$0xff]
    %v87 = vld [vmem:[%s2 + $0x78] sm:$0xff]
    %v88 = vadd.f32 %v56, %v72
    %v89 = vadd.f32 %v57, %v73
    %v90 = vadd.f32 %v58, %v74
    %v91 = vadd.f32 %v59, %v75
    %v92 = vadd.f32 %v60, %v76
    %v93 = vadd.f32 %v61, %v77
    %v94 = vadd.f32 %v62, %v78
    %v95 = vadd.f32 %v63, %v79
    %v96 = vadd.f32 %v64, %v80
    %v97 = vadd.f32 %v65, %v81
    %v98 = vadd.f32 %v66, %v82
    %v99 = vadd.f32 %v67, %v83
    %v100 = vadd.f32 %v68, %v84
    %v101 = vadd.f32 %v69, %v85
    %v102 = vadd.f32 %v70, %v86
    %v103 = vadd.f32 %v71, %v87
    %v104 = vld [vmem:[%s3] sm:$0x1]
    %106 = vset.pattern.permute.xlu0 0
    %107 = vperm.xlu0 %106, %v88
    %v108 = vpop.permute.xlu0 %107
    %111 = vset.pattern.permute.xlu0 0
    %112 = vperm.xlu0 %111, %v89
    %v113 = vpop.permute.xlu0 %112
    %116 = vset.pattern.permute.xlu0 0
    %117 = vperm.xlu0 %116, %v90
    %v118 = vpop.permute.xlu0 %117
    %121 = vset.pattern.permute.xlu0 0
    %122 = vperm.xlu0 %121, %v91
    %v123 = vpop.permute.xlu0 %122
    %126 = vset.pattern.permute.xlu0 0
    %127 = vperm.xlu0 %126, %v92
    %v128 = vpop.permute.xlu0 %127
    %131 = vset.pattern.permute.xlu0 0
    %132 = vperm.xlu0 %131, %v93
    %v133 = vpop.permute.xlu0 %132
    %136 = vset.pattern.permute.xlu0 0
    %137 = vperm.xlu0 %136, %v94
    %v138 = vpop.permute.xlu0 %137
    %141 = vset.pattern.permute.xlu0 0
    %142 = vperm.xlu0 %141, %v95
    %v143 = vpop.permute.xlu0 %142
    %146 = vset.pattern.permute.xlu0 0
    %147 = vperm.xlu0 %146, %v96
    %v148 = vpop.permute.xlu0 %147
    %151 = vset.pattern.permute.xlu0 0
    %152 = vperm.xlu0 %151, %v97
    %v153 = vpop.permute.xlu0 %152
    %156 = vset.pattern.permute.xlu0 0
    %157 = vperm.xlu0 %156, %v98
    %v158 = vpop.permute.xlu0 %157
    %161 = vset.pattern.permute.xlu0 0
    %162 = vperm.xlu0 %161, %v99
    %v163 = vpop.permute.xlu0 %162
    %166 = vset.pattern.permute.xlu0 0
    %167 = vperm.xlu0 %166, %v100
    %v168 = vpop.permute.xlu0 %167
    %171 = vset.pattern.permute.xlu0 0
    %172 = vperm.xlu0 %171, %v101
    %v173 = vpop.permute.xlu0 %172
    %176 = vset.pattern.permute.xlu0 0
    %177 = vperm.xlu0 %176, %v102
    %v178 = vpop.permute.xlu0 %177
    %181 = vset.pattern.permute.xlu0 0
    %182 = vperm.xlu0 %181, %v103
    %v183 = vpop.permute.xlu0 %182
    %v186 = vlaneseq
    %v187 = vshrl.u32 %v186, 7
    %v188 = vsub.s32 0, %v187
    %v189 = vrot.slane %v104, %v188
    %v191 = vsub.f32 %v108, %v189
    %v192 = vsub.f32 %v113, %v189
    %v193 = vsub.f32 %v118, %v189
    %v194 = vsub.f32 %v123, %v189
    %v195 = vsub.f32 %v128, %v189
    %v196 = vsub.f32 %v133, %v189
    %v197 = vsub.f32 %v138, %v189
    %v198 = vsub.f32 %v143, %v189
    %v199 = vsub.f32 %v148, %v189
    %v200 = vsub.f32 %v153, %v189
    %v201 = vsub.f32 %v158, %v189
    %v202 = vsub.f32 %v163, %v189
    %v203 = vsub.f32 %v168, %v189
    %v204 = vsub.f32 %v173, %v189
    %v205 = vsub.f32 %v178, %v189
    %v206 = vsub.f32 %v183, %v189
    %v207 = vld [vmem:[%s4] sm:$0x1]
    %v209 = vlaneseq
    %v210 = vshrl.u32 %v209, 7
    %v211 = vsub.s32 0, %v210
    %v212 = vrot.slane %v207, %v211
    %v214 = vmul.f32 %v191, %v212
    %v215 = vmul.f32 %v192, %v212
    %v216 = vmul.f32 %v193, %v212
    %v217 = vmul.f32 %v194, %v212
    %v218 = vmul.f32 %v195, %v212
    %v219 = vmul.f32 %v196, %v212
    %v220 = vmul.f32 %v197, %v212
    %v221 = vmul.f32 %v198, %v212
    %v222 = vmul.f32 %v199, %v212
    %v223 = vmul.f32 %v200, %v212
    %v224 = vmul.f32 %v201, %v212
    %v225 = vmul.f32 %v202, %v212
    %v226 = vmul.f32 %v203, %v212
    %v227 = vmul.f32 %v204, %v212
    %v228 = vmul.f32 %v205, %v212
    %v229 = vmul.f32 %v206, %v212
    %v230 = vmul.f32 %v214, %v214
    %v231 = vmul.f32 %v215, %v215
    %v232 = vmul.f32 %v216, %v216
    %v233 = vmul.f32 %v217, %v217
    %v234 = vmul.f32 %v218, %v218
    %v235 = vmul.f32 %v219, %v219
    %v236 = vmul.f32 %v220, %v220
    %v237 = vmul.f32 %v221, %v221
    %v238 = vmul.f32 %v222, %v222
    %v239 = vmul.f32 %v223, %v223
    %v240 = vmul.f32 %v224, %v224
    %v241 = vmul.f32 %v225, %v225
    %v242 = vmul.f32 %v226, %v226
    %v243 = vmul.f32 %v227, %v227
    %v244 = vmul.f32 %v228, %v228
    %v245 = vmul.f32 %v229, %v229
    %v246 = vmul.f32 %v230, -0.5
    %v247 = vmul.f32 %v231, -0.5
    %v248 = vmul.f32 %v232, -0.5
    %v249 = vmul.f32 %v233, -0.5
    %v250 = vmul.f32 %v234, -0.5
    %v251 = vmul.f32 %v235, -0.5
    %v252 = vmul.f32 %v236, -0.5
    %v253 = vmul.f32 %v237, -0.5
    %v254 = vmul.f32 %v238, -0.5
    %v255 = vmul.f32 %v239, -0.5
    %v256 = vmul.f32 %v240, -0.5
    %v257 = vmul.f32 %v241, -0.5
    %v258 = vmul.f32 %v242, -0.5
    %v259 = vmul.f32 %v243, -0.5
    %v260 = vmul.f32 %v244, -0.5
    %v261 = vmul.f32 %v245, -0.5
    %v262 = vmul.f32 %v246, 1.442695
    %v263 = vpow.pop %v262
    %v264 = vmul.f32 %v247, 1.442695
    %v265 = vpow.pop %v264
    %v266 = vmul.f32 %v248, 1.442695
    %v267 = vpow.pop %v266
    %v268 = vmul.f32 %v249, 1.442695
    %v269 = vpow.pop %v268
    %v270 = vmul.f32 %v250, 1.442695
    %v271 = vpow.pop %v270
    %v272 = vmul.f32 %v251, 1.442695
    %v273 = vpow.pop %v272
    %v274 = vmul.f32 %v252, 1.442695
    %v275 = vpow.pop %v274
    %v276 = vmul.f32 %v253, 1.442695
    %v277 = vpow.pop %v276
    %v278 = vmul.f32 %v254, 1.442695
    %v279 = vpow.pop %v278
    %v280 = vmul.f32 %v255, 1.442695
    %v281 = vpow.pop %v280
    %v282 = vmul.f32 %v256, 1.442695
    %v283 = vpow.pop %v282
    %v284 = vmul.f32 %v257, 1.442695
    %v285 = vpow.pop %v284
    %v286 = vmul.f32 %v258, 1.442695
    %v287 = vpow.pop %v286
    %v288 = vmul.f32 %v259, 1.442695
    %v289 = vpow.pop %v288
    %v290 = vmul.f32 %v260, 1.442695
    %v291 = vpow.pop %v290
    %v292 = vmul.f32 %v261, 1.442695
    %v293 = vpow.pop %v292
    %v294 = vld [vmem:[%s5] sm:$0x1]
    %v296 = vlaneseq
    %v297 = vshrl.u32 %v296, 7
    %v298 = vsub.s32 0, %v297
    %v299 = vrot.slane %v294, %v298
    %v301 = vmul.f32 %v263, %v299
    %v302 = vmul.f32 %v265, %v299
    %v303 = vmul.f32 %v267, %v299
    %v304 = vmul.f32 %v269, %v299
    %v305 = vmul.f32 %v271, %v299
    %v306 = vmul.f32 %v273, %v299
    %v307 = vmul.f32 %v275, %v299
    %v308 = vmul.f32 %v277, %v299
    %v309 = vmul.f32 %v279, %v299
    %v310 = vmul.f32 %v281, %v299
    %v311 = vmul.f32 %v283, %v299
    %v312 = vmul.f32 %v285, %v299
    %v313 = vmul.f32 %v287, %v299
    %v314 = vmul.f32 %v289, %v299
    %v315 = vmul.f32 %v291, %v299
    %v316 = vmul.f32 %v293, %v299
    %317 = vst [vmem:[#allocation2] sm:$0xff] %v301
    %318 = vst [vmem:[#allocation2 + $0x8] sm:$0xff] %v302
    %319 = vst [vmem:[#allocation2 + $0x10] sm:$0xff] %v303
    %320 = vst [vmem:[#allocation2 + $0x18] sm:$0xff] %v304
    %321 = vst [vmem:[#allocation2 + $0x20] sm:$0xff] %v305
    %322 = vst [vmem:[#allocation2 + $0x28] sm:$0xff] %v306
    %323 = vst [vmem:[#allocation2 + $0x30] sm:$0xff] %v307
    %324 = vst [vmem:[#allocation2 + $0x38] sm:$0xff] %v308
    %325 = vst [vmem:[#allocation2 + $0x40] sm:$0xff] %v309
    %326 = vst [vmem:[#allocation2 + $0x48] sm:$0xff] %v310
    %327 = vst [vmem:[#allocation2 + $0x50] sm:$0xff] %v311
    %328 = vst [vmem:[#allocation2 + $0x58] sm:$0xff] %v312
    %329 = vst [vmem:[#allocation2 + $0x60] sm:$0xff] %v313
    %330 = vst [vmem:[#allocation2 + $0x68] sm:$0xff] %v314
    %331 = vst [vmem:[#allocation2 + $0x70] sm:$0xff] %v315
    %332 = vst [vmem:[#allocation2 + $0x78] sm:$0xff] %v316
    // Predicated region
    $region26: #{tpu_custom_call.1} parent=1 // pred_check
      _
    $region27: #{tpu_custom_call.1} parent=1 // pred_check_branch
      %334 = sbr.rel (0) target = $region29
    $region28: #{tpu_custom_call.1} parent=1 // pred_region
      %s336 = ssub.s32 2048, 2048
      %337 = vsyncadd [#allocation3], %s336
      %s338 = sshll.u32 [#allocation2], 4
      %s339 = int_to_ptr.vmem [resolvable:$true] %s338
      %344 = dma.vmem_to_hbm [thread:$0]  %s339, 2048, %s6, [#allocation3], 128, 128, 8
    $region29: #{tpu_custom_call.1} parent=1 // pred_fallthru
      _
    // Predicated region
    $region30: #{tpu_custom_call.1} parent=1 // pred_check
      _
    $region31: #{tpu_custom_call.1} parent=1 // pred_check_branch
      %346 = sbr.rel (0) target = $region33
    $region32: #{tpu_custom_call.1} parent=1 // pred_region
      %347 = dma.done [#allocation3], 2048
    $region33: #{tpu_custom_call.1} parent=1 // pred_fallthru
      _
    %348 = vsyncpa [#allocation3], 1

</llo_original>
